<compile_context>
chip_gen: v7x
topology: tpu7x:2x2x1
jax: 0.10.0
libtpu: 0.0.40
codegen_flags: <defaults>
</compile_context>

<pallas_src>
import functools

import jax
import jax.numpy as jnp
import numpy as np
from jax import lax
from jax.experimental import pallas as pl
from jax.experimental.pallas import tpu as pltpu

BN_EPS = 1e-5
LANE = 128


def _round_up(x, m):
    return (x + m - 1) // m * m


def conv_pool_kernel(x_ref, w_ref, b_ref, pooled_ref, stats_ref, *,
                     pooling, m_total, mask_rows):
    """Pass 1: conv-as-matmul + bias + ReLU + 2x2 pool, plus BN sum/sumsq accumulation.

    x_ref:      (4, TM, CKK) bf16
    w_ref:      (CKK, Cpad)  bf16
    b_ref:      (1, Cpad)    f32
    pooled_ref: (TM, Cpad)   f32
    stats_ref:  (2, Cpad)    f32   row 0 = sum, row 1 = sum of squares (resident accumulator)
    """
    i = pl.program_id(0)

    @pl.when(i == 0)
    def _init():
        stats_ref[...] = jnp.zeros_like(stats_ref)

    x = x_ref[...]
    tm = x.shape[1]
    w = w_ref[...]
    b = b_ref[...]  # (1, Cpad) f32

    # One fused MXU matmul for all 4 pool-window members of this row tile.
    y = jnp.dot(x.reshape(4 * tm, x.shape[2]), w,
                preferred_element_type=jnp.float32)
    y = y.reshape(4, tm, y.shape[-1])

    if pooling == "max":
        # max_q relu(y_q + b) == relu(max_q y_q + b): one bias add, one ReLU.
        pooled = jnp.maximum(jnp.max(y, axis=0) + b, 0.0)
    else:  # 'avg': bias + ReLU must be applied per window member before averaging
        pooled = jnp.mean(jnp.maximum(y + b, 0.0), axis=0)

    pooled_ref[...] = pooled.astype(pooled_ref.dtype)

    # Per-channel sum / sum-of-squares over *valid* rows (BatchNorm pass 1).
    if mask_rows:
        row = i * tm + lax.broadcasted_iota(jnp.int32, (tm, 1), 0)
        pv = pooled * (row < m_total).astype(jnp.float32)
    else:
        pv = pooled
    s = jnp.sum(pv, axis=0, keepdims=True)
    ss = jnp.sum(pv * pooled, axis=0, keepdims=True)  # valid mask is 0/1
    stats_ref[...] += jnp.concatenate([s, ss], axis=0)


def normalize_kernel(pooled_ref, scale_ref, shift_ref, o_ref):
    """Pass 2: per-channel affine normalize  out = pooled * scale + shift."""
    o_ref[...] = (pooled_ref[...] * scale_ref[...] + shift_ref[...]).astype(o_ref.dtype)


def cnn_block_forward(x_nchw, w_oihw, bias, gamma, beta, *,
                      pooling="max", batch_norm=True, block_m=512):
    """Forward pass of CNNBlock. Input/output are NCHW, like the PyTorch module."""
    N, Cin, H, W = x_nchw.shape
    Cout, _, K, _ = w_oihw.shape
    assert K == 3 and H % 2 == 0 and W % 2 == 0
    Hp, Wp = H // 2, W // 2
    M = N * Hp * Wp
    CKK = Cin * K * K
    Cpad = _round_up(Cout, LANE)
    TM = min(block_m, _round_up(M, 8))
    Mpad = _round_up(M, TM)
    n_tiles = Mpad // TM

    # ---- pure-JAX glue: NHWC, spatial zero-pad, im2col ordered (quadrant, n, i, j, kh*kw*cin) ----
    x_nhwc = jnp.transpose(x_nchw, (0, 2, 3, 1))
    x_sp = jnp.pad(x_nhwc, ((0, 0), (1, 1), (1, 1), (0, 0)))
    taps = [x_sp[:, kh:kh + H, kw:kw + W, :] for kh in range(K) for kw in range(K)]
    patches = jnp.stack(taps, axis=3).reshape(N, H, W, CKK)
    patches = patches.reshape(N, Hp, 2, Wp, 2, CKK)
    patches = jnp.transpose(patches, (2, 4, 0, 1, 3, 5))  # (a, b, n, i, j, CKK)
    x_cols = patches.reshape(4, M, CKK)
    if Mpad != M:
        x_cols = jnp.pad(x_cols, ((0, 0), (0, Mpad - M), (0, 0)))
    x_cols = x_cols.astype(jnp.bfloat16)
    # TODO(synk): on v5e, replace the 9x im2col HBM blow-up with in-kernel tap-shifted
    # (TM, Cin) x (Cin, Cout) matmul accumulation over the padded NHWC input.

    # Weight flattened to (kh, kw, cin) to match the patch ordering; lane-pad Cout to 128.
    w_mat = jnp.transpose(w_oihw, (2, 3, 1, 0)).reshape(CKK, Cout)
    w_mat = jnp.pad(w_mat, ((0, 0), (0, Cpad - Cout))).astype(jnp.bfloat16)
    b_row = jnp.pad(bias.astype(jnp.float32), (0, Cpad - Cout)).reshape(1, Cpad)

    kernel = functools.partial(conv_pool_kernel, pooling=pooling,
                               m_total=M, mask_rows=(Mpad != M))
    flops = 2 * 4 * Mpad * CKK * Cpad
    bytes_accessed = (4 * Mpad * CKK * 2 + CKK * Cpad * 2
                      + Mpad * Cpad * 4 + 3 * Cpad * 4)

    pooled, stats = pl.pallas_call(
        kernel,
        out_shape=(jax.ShapeDtypeStruct((Mpad, Cpad), jnp.float32),
                   jax.ShapeDtypeStruct((2, Cpad), jnp.float32)),
        grid_spec=pltpu.PrefetchScalarGridSpec(
            num_scalar_prefetch=0,
            grid=(n_tiles,),
            in_specs=[
                pl.BlockSpec((4, TM, CKK), lambda i: (0, i, 0)),
                pl.BlockSpec((CKK, Cpad), lambda i: (0, 0)),
                pl.BlockSpec((1, Cpad), lambda i: (0, 0)),
            ],
            out_specs=(
                pl.BlockSpec((TM, Cpad), lambda i: (i, 0)),
                pl.BlockSpec((2, Cpad), lambda i: (0, 0)),  # resident stats accumulator
            ),
        ),
        compiler_params=pltpu.CompilerParams(
            # BN stats accumulate across the row-tile axis -> must stay "arbitrary".
            dimension_semantics=("arbitrary",),
            vmem_limit_bytes=64 * 1024 * 1024),
        cost_estimate=pl.CostEstimate(flops=flops, transcendentals=0,
                                      bytes_accessed=bytes_accessed),
    )(x_cols, w_mat, b_row)

    if batch_norm:
        # BatchNorm2d training mode: batch stats over (N, H', W'), biased variance.
        mean = stats[0] / float(M)
        var = stats[1] / float(M) - mean * mean
        inv = lax.rsqrt(var + BN_EPS)
        g = jnp.pad(gamma.astype(jnp.float32), (0, Cpad - Cout), constant_values=1.0)
        be = jnp.pad(beta.astype(jnp.float32), (0, Cpad - Cout))
        scale = (g * inv).reshape(1, Cpad)
        shift = (be - mean * g * inv).reshape(1, Cpad)

        out2d = pl.pallas_call(
            normalize_kernel,
            out_shape=jax.ShapeDtypeStruct((Mpad, Cpad), x_nchw.dtype),
            grid_spec=pltpu.PrefetchScalarGridSpec(
                num_scalar_prefetch=0,
                grid=(n_tiles,),
                in_specs=[
                    pl.BlockSpec((TM, Cpad), lambda i: (i, 0)),
                    pl.BlockSpec((1, Cpad), lambda i: (0, 0)),
                    pl.BlockSpec((1, Cpad), lambda i: (0, 0)),
                ],
                out_specs=pl.BlockSpec((TM, Cpad), lambda i: (i, 0)),
            ),
            compiler_params=pltpu.CompilerParams(
                dimension_semantics=("parallel",),
                vmem_limit_bytes=64 * 1024 * 1024),
        )(pooled, scale, shift)
    else:
        out2d = pooled.astype(x_nchw.dtype)

    out = out2d[:M, :Cout].reshape(N, Hp, Wp, Cout)
    return jnp.transpose(out, (0, 3, 1, 2))  # back to NCHW (N, Cout, H//2, W//2)


def reference_forward(x, w, b, gamma, beta):
    """Pure-JAX reference mirroring the PyTorch module (training-mode BatchNorm, max pool)."""
    conv = lax.conv_general_dilated(x, w, (1, 1), ((1, 1), (1, 1)),
                                    dimension_numbers=("NCHW", "OIHW", "NCHW"))
    conv = conv + b.reshape(1, -1, 1, 1)
    act = jnp.maximum(conv, 0.0)
    pooled = lax.reduce_window(act, -jnp.inf, lax.max, (1, 1, 2, 2), (1, 1, 2, 2), "VALID")
    mean = pooled.mean(axis=(0, 2, 3), keepdims=True)
    var = ((pooled - mean) ** 2).mean(axis=(0, 2, 3), keepdims=True)
    return ((pooled - mean) * lax.rsqrt(var + BN_EPS)
            * gamma.reshape(1, -1, 1, 1) + beta.reshape(1, -1, 1, 1))


def _make_inputs(key, N, Cin, Cout, H, W):
    kx, kw, kb, kg, kbe = jax.random.split(key, 5)
    x = jax.random.normal(kx, (N, Cin, H, W), jnp.float32)
    w = 0.1 * jax.random.normal(kw, (Cout, Cin, 3, 3), jnp.float32)
    b = 0.1 * jax.random.normal(kb, (Cout,), jnp.float32)
    gamma = 1.0 + 0.1 * jax.random.normal(kg, (Cout,), jnp.float32)
    beta = 0.1 * jax.random.normal(kbe, (Cout,), jnp.float32)
    return x, w, b, gamma, beta


if __name__ == "__main__":
    key = jax.random.PRNGKey(0)
    k1, k2 = jax.random.split(key, 2)

    # Config 1: CNNBlock(in_channels=4, out_channels=8), single row tile.
    x, w, b, gamma, beta = _make_inputs(k1, N=2, Cin=4, Cout=8, H=16, W=16)
    out = jax.jit(cnn_block_forward)(x, w, b, gamma, beta)
    out = jax.block_until_ready(out)
    assert out.shape == (2, 8, 8, 8)
    ref = reference_forward(x, w, b, gamma, beta)
    np.testing.assert_allclose(np.asarray(out), np.asarray(ref), rtol=2e-2, atol=2e-2)

    # Config 2: exercises multi-tile grid + row-padding mask (M=200, TM=128, Mpad=256).
    x2, w2, b2, gamma2, beta2 = _make_inputs(k2, N=2, Cin=8, Cout=16, H=20, W=20)
    fwd2 = jax.jit(functools.partial(cnn_block_forward, block_m=128))
    out2 = jax.block_until_ready(fwd2(x2, w2, b2, gamma2, beta2))
    assert out2.shape == (2, 16, 10, 10)
    ref2 = reference_forward(x2, w2, b2, gamma2, beta2)
    np.testing.assert_allclose(np.asarray(out2), np.asarray(ref2), rtol=2e-2, atol=2e-2)

    print("KERNEL_OK")
</pallas_src>

<mosaic_0001>
module attributes {stable_mosaic.version = 11 : i64} {
  func.func @conv_pool_kernel(%arg0: i32, %arg1: memref<4x128x36xbf16, #tpu.memory_space<vmem>>, %arg2: memref<36x128xbf16, #tpu.memory_space<vmem>>, %arg3: memref<1x128xf32, #tpu.memory_space<vmem>>, %arg4: memref<128x128xf32, #tpu.memory_space<vmem>>, %arg5: memref<2x128xf32, #tpu.memory_space<vmem>>) attributes {dimension_semantics = [#tpu.dimension_semantics<arbitrary>], iteration_bounds = array<i64: 1>, scalar_prefetch = 0 : i64, scratch_operands = 0 : i64, tpu.core_type = #tpu.core_type<tc>, window_params = [{transform_indices = @transform_0, window_bounds = array<i64: 4, 128, 36>}, {pipeline_mode = #tpu.pipeline_mode<synchronous>, transform_indices = @transform_1, window_bounds = array<i64: 36, 128>}, {pipeline_mode = #tpu.pipeline_mode<synchronous>, transform_indices = @transform_2, window_bounds = array<i64: 1, 128>}, {transform_indices = @transform_3, window_bounds = array<i64: 128, 128>}, {pipeline_mode = #tpu.pipeline_mode<synchronous>, transform_indices = @transform_4, window_bounds = array<i64: 2, 128>}]} {
    %c0_i32 = arith.constant 0 : i32
    %0 = arith.cmpi eq, %arg0, %c0_i32 : i32
    %1 = arith.extui %0 : i1 to i32
    %c0_i32_0 = arith.constant 0 : i32
    %2 = arith.cmpi ne, %1, %c0_i32_0 : i32
    scf.if %2 {
      %cst_17 = arith.constant 0.000000e+00 : f32
      %24 = vector.broadcast %cst_17 : f32 to vector<2x128xf32>
      %c0_18 = arith.constant 0 : index
      %c0_19 = arith.constant 0 : index
      %25 = vector.load %arg5[%c0_18, %c0_19] : memref<2x128xf32, #tpu.memory_space<vmem>>, vector<2x128xf32>
      tpu.vector_store %arg5[%c0_18, %c0_19], %24 {strides = array<i32>} : memref<2x128xf32, #tpu.memory_space<vmem>>, vector<2x128xf32>,
    } else {
    }
    %c0 = arith.constant 0 : index
    %c0_1 = arith.constant 0 : index
    %c0_2 = arith.constant 0 : index
    %3 = vector.load %arg1[%c0, %c0_1, %c0_2] : memref<4x128x36xbf16, #tpu.memory_space<vmem>>, vector<4x128x36xbf16>
    %c0_3 = arith.constant 0 : index
    %c0_4 = arith.constant 0 : index
    %4 = vector.load %arg2[%c0_3, %c0_4] : memref<36x128xbf16, #tpu.memory_space<vmem>>, vector<36x128xbf16>
    %c0_5 = arith.constant 0 : index
    %c0_6 = arith.constant 0 : index
    %5 = vector.load %arg3[%c0_5, %c0_6] : memref<1x128xf32, #tpu.memory_space<vmem>>, vector<1x128xf32>
    %6 = vector.shape_cast %3 : vector<4x128x36xbf16> to vector<512x36xbf16>
    %cst = arith.constant dense<0.000000e+00> : vector<512x128xf32>
    %7 = tpu.matmul %6, %4, %cst {dimension_numbers = #tpu.dot_dimension_numbers<[1], [0], [0], [1], [0, 0, 1, 1], [], []>} : vector<512x36xbf16>, vector<36x128xbf16>, vector<512x128xf32> -> vector<512x128xf32>
    %8 = vector.shape_cast %7 : vector<512x128xf32> to vector<4x128x128xf32>
    %cst_7 = arith.constant dense<0xFF800000> : vector<128x128xf32>
    %9 = vector.multi_reduction <maximumf>, %8, %cst_7 [0] : vector<4x128x128xf32> to vector<128x128xf32>
    %10 = vector.broadcast %5 : vector<1x128xf32> to vector<128x128xf32>
    %11 = arith.addf %9, %10 : vector<128x128xf32>
    %cst_8 = arith.constant 0.000000e+00 : f32
    %12 = vector.broadcast %cst_8 : f32 to vector<128x128xf32>
    %13 = arith.maximumf %11, %12 : vector<128x128xf32>
    %c0_9 = arith.constant 0 : index
    %c0_10 = arith.constant 0 : index
    %14 = vector.load %arg4[%c0_9, %c0_10] : memref<128x128xf32, #tpu.memory_space<vmem>>, vector<128x128xf32>
    tpu.vector_store %arg4[%c0_9, %c0_10], %13 {strides = array<i32>} : memref<128x128xf32, #tpu.memory_space<vmem>>, vector<128x128xf32>,
    %cst_11 = arith.constant dense<0.000000e+00> : vector<128xf32>
    %15 = vector.multi_reduction <add>, %13, %cst_11 [0] : vector<128x128xf32> to vector<128xf32>
    %16 = vector.shape_cast %15 : vector<128xf32> to vector<1x128xf32>
    %17 = arith.mulf %13, %13 : vector<128x128xf32>
    %cst_12 = arith.constant dense<0.000000e+00> : vector<128xf32>
    %18 = vector.multi_reduction <add>, %17, %cst_12 [0] : vector<128x128xf32> to vector<128xf32>
    %19 = vector.shape_cast %18 : vector<128xf32> to vector<1x128xf32>
    %c0_13 = arith.constant 0 : index
    %c0_14 = arith.constant 0 : index
    %20 = vector.load %arg5[%c0_13, %c0_14] : memref<2x128xf32, #tpu.memory_space<vmem>>, vector<2x128xf32>
    %21 = tpu.concatenate %16, %19 in 0 : vector<1x128xf32>, vector<1x128xf32> -> vector<2x128xf32>
    %22 = arith.addf %20, %21 : vector<2x128xf32>
    %c0_15 = arith.constant 0 : index
    %c0_16 = arith.constant 0 : index
    %23 = vector.load %arg5[%c0_15, %c0_16] : memref<2x128xf32, #tpu.memory_space<vmem>>, vector<2x128xf32>
    tpu.vector_store %arg5[%c0_15, %c0_16], %22 {strides = array<i32>} : memref<2x128xf32, #tpu.memory_space<vmem>>, vector<2x128xf32>,
    return
  }
  func.func @transform_0(%arg0: i32) -> (i32, i32, i32) {
    %c0_i32 = arith.constant 0 : i32
    %c0_i32_0 = arith.constant 0 : i32
    %c0_i32_1 = arith.constant 0 : i32
    return %c0_i32, %arg0, %c0_i32_0 : i32, i32, i32
  }
  func.func @transform_1(%arg0: i32) -> (i32, i32) {
    %c0_i32 = arith.constant 0 : i32
    %c0_i32_0 = arith.constant 0 : i32
    %c0_i32_1 = arith.constant 0 : i32
    return %c0_i32, %c0_i32_0 : i32, i32
  }
  func.func @transform_2(%arg0: i32) -> (i32, i32) {
    %c0_i32 = arith.constant 0 : i32
    %c0_i32_0 = arith.constant 0 : i32
    %c0_i32_1 = arith.constant 0 : i32
    return %c0_i32, %c0_i32_0 : i32, i32
  }
  func.func @transform_3(%arg0: i32) -> (i32, i32) {
    %c0_i32 = arith.constant 0 : i32
    %c0_i32_0 = arith.constant 0 : i32
    return %arg0, %c0_i32 : i32, i32
  }
  func.func @transform_4(%arg0: i32) -> (i32, i32) {
    %c0_i32 = arith.constant 0 : i32
    %c0_i32_0 = arith.constant 0 : i32
    %c0_i32_1 = arith.constant 0 : i32
    return %c0_i32, %c0_i32_0 : i32, i32
  }
}

module attributes {stable_mosaic.version = 11 : i64} {
  func.func @normalize_kernel(%arg0: i32, %arg1: memref<128x128xf32, #tpu.memory_space<vmem>>, %arg2: memref<1x128xf32, #tpu.memory_space<vmem>>, %arg3: memref<1x128xf32, #tpu.memory_space<vmem>>, %arg4: memref<128x128xf32, #tpu.memory_space<vmem>>) attributes {dimension_semantics = [#tpu.dimension_semantics<parallel>], iteration_bounds = array<i64: 1>, scalar_prefetch = 0 : i64, scratch_operands = 0 : i64, tpu.core_type = #tpu.core_type<tc>, window_params = [{transform_indices = @transform_0, window_bounds = array<i64: 128, 128>}, {pipeline_mode = #tpu.pipeline_mode<synchronous>, transform_indices = @transform_1, window_bounds = array<i64: 1, 128>}, {pipeline_mode = #tpu.pipeline_mode<synchronous>, transform_indices = @transform_2, window_bounds = array<i64: 1, 128>}, {transform_indices = @transform_3, window_bounds = array<i64: 128, 128>}]} {
    %c0 = arith.constant 0 : index
    %c0_0 = arith.constant 0 : index
    %0 = vector.load %arg1[%c0, %c0_0] : memref<128x128xf32, #tpu.memory_space<vmem>>, vector<128x128xf32>
    %c0_1 = arith.constant 0 : index
    %c0_2 = arith.constant 0 : index
    %1 = vector.load %arg2[%c0_1, %c0_2] : memref<1x128xf32, #tpu.memory_space<vmem>>, vector<1x128xf32>
    %2 = vector.broadcast %1 : vector<1x128xf32> to vector<128x128xf32>
    %3 = arith.mulf %0, %2 : vector<128x128xf32>
    %c0_3 = arith.constant 0 : index
    %c0_4 = arith.constant 0 : index
    %4 = vector.load %arg3[%c0_3, %c0_4] : memref<1x128xf32, #tpu.memory_space<vmem>>, vector<1x128xf32>
    %5 = vector.broadcast %4 : vector<1x128xf32> to vector<128x128xf32>
    %6 = arith.addf %3, %5 : vector<128x128xf32>
    %c0_5 = arith.constant 0 : index
    %c0_6 = arith.constant 0 : index
    %7 = vector.load %arg4[%c0_5, %c0_6] : memref<128x128xf32, #tpu.memory_space<vmem>>, vector<128x128xf32>
    tpu.vector_store %arg4[%c0_5, %c0_6], %6 {strides = array<i32>} : memref<128x128xf32, #tpu.memory_space<vmem>>, vector<128x128xf32>,
    return
  }
  func.func @transform_0(%arg0: i32) -> (i32, i32) {
    %c0_i32 = arith.constant 0 : i32
    %c0_i32_0 = arith.constant 0 : i32
    return %arg0, %c0_i32 : i32, i32
  }
  func.func @transform_1(%arg0: i32) -> (i32, i32) {
    %c0_i32 = arith.constant 0 : i32
    %c0_i32_0 = arith.constant 0 : i32
    %c0_i32_1 = arith.constant 0 : i32
    return %c0_i32, %c0_i32_0 : i32, i32
  }
  func.func @transform_2(%arg0: i32) -> (i32, i32) {
    %c0_i32 = arith.constant 0 : i32
    %c0_i32_0 = arith.constant 0 : i32
    %c0_i32_1 = arith.constant 0 : i32
    return %c0_i32, %c0_i32_0 : i32, i32
  }
  func.func @transform_3(%arg0: i32) -> (i32, i32) {
    %c0_i32 = arith.constant 0 : i32
    %c0_i32_0 = arith.constant 0 : i32
    return %arg0, %c0_i32 : i32, i32
  }
}

</mosaic_0001>

<llo_original>
// kernel: cnn_block_forward.3
$region0: #{cnn_block_forward.3}
  #allocation0 [shape = 'u32[]', space=smem, size = 0x4, offset = 0x4, fixed_abs, tag = 'smem constant byte address 0x4 - core index']
  #allocation1 [shape = 'u32[144,128]{1,0:T(1,128)}', space=vmem, size = 0x12000, scoped, tag = 'internal scratch']
  %s0 = inlined_call_operand.hbm [shape: f32[128,128], index: 0, kind: input, shape index: {}]
  %s1 = inlined_call_operand.hbm [shape: f32[1,128], index: 1, kind: input, shape index: {}]
  %s2 = inlined_call_operand.hbm [shape: f32[1,128], index: 2, kind: input, shape index: {}]
  %s3 = inlined_call_operand.hbm [shape: f32[128,128], index: 3, kind: output, shape index: {}]
  %s4 = sld [smem:[#allocation0]]
  $region34: #{cnn_block_forward.3} parent=0
    _
  %s6 = ssub.s32 1, %s4
  %s7 = scalar_select 0, %s6, %s4
  $region1: #{cnn_block_forward.3} parent=0
    #allocation2 [shape = 'u8[65536]{0}', space=vmem, size = 0x10000, scoped, tag = 'input window, operand 0, single buffered']
    #allocation3 [shape = 's32[1]{0}', space=sflag, size = 0x4, scoped, tag = 'scoped memory for cnn_block_forward.3']
    #allocation4 [shape = 's32[1]{0}', space=sflag, size = 0x4, scoped, tag = 'scoped memory for cnn_block_forward.3']
    #allocation5 [shape = 'u8[512]{0}', space=vmem, size = 0x400, scoped, tag = 'input window, operand 1, single buffered']
    #allocation6 [shape = 's32[1]{0}', space=sflag, size = 0x4, scoped, tag = 'scoped memory for cnn_block_forward.3']
    #allocation7 [shape = 'u8[512]{0}', space=vmem, size = 0x400, scoped, tag = 'input window, operand 2, single buffered']
    #allocation8 [shape = 'u8[65536]{0}', space=vmem, size = 0x10000, scoped, tag = 'output window, operand 0, single buffered']
    %8 = vsyncpa [#allocation3], 0
    %9 = vsyncpa [#allocation6], 0
    %10 = vsyncpa [#allocation4], 0
    // Predicated region
    $region2: #{cnn_block_forward.3} parent=1 // pred_check
      _
    $region3: #{cnn_block_forward.3} parent=1 // pred_check_branch
      %12 = sbr.rel (0) target = $region5
    $region4: #{cnn_block_forward.3} parent=1 // pred_region
      %s14 = ssub.s32 2048, 2048
      %15 = vsyncadd [#allocation3], %s14
      %s16 = sshll.u32 [#allocation2], 4
      %s17 = int_to_ptr.vmem [resolvable:$true] %s16
      %22 = dma.hbm_to_vmem [thread:$0]  %s0, 2048, %s17, [#allocation3], 128, 128, 8
    $region5: #{cnn_block_forward.3} parent=1 // pred_fallthru
      _
    // Predicated region
    $region6: #{cnn_block_forward.3} parent=1 // pred_check
      _
    $region7: #{cnn_block_forward.3} parent=1 // pred_check_branch
      %24 = sbr.rel (0) target = $region9
    $region8: #{cnn_block_forward.3} parent=1 // pred_region
      %s26 = ssub.s32 16, 16
      %27 = vsyncadd [#allocation6], %s26
      %s29 = sshll.u32 [#allocation5], 4
      %s30 = int_to_ptr.vmem [resolvable:$true] %s29
      %32 = dma.hbm_to_vmem [thread:$0]  %s1, 16, %s30, [#allocation6]
    $region9: #{cnn_block_forward.3} parent=1 // pred_fallthru
      _
    // Predicated region
    $region10: #{cnn_block_forward.3} parent=1 // pred_check
      _
    $region11: #{cnn_block_forward.3} parent=1 // pred_check_branch
      %34 = sbr.rel (0) target = $region13
    $region12: #{cnn_block_forward.3} parent=1 // pred_region
      %s36 = ssub.s32 16, 16
      %37 = vsyncadd [#allocation6], %s36
      %s39 = sshll.u32 [#allocation7], 4
      %s40 = int_to_ptr.vmem [resolvable:$true] %s39
      %42 = dma.hbm_to_vmem [thread:$0]  %s2, 16, %s40, [#allocation6]
    $region13: #{cnn_block_forward.3} parent=1 // pred_fallthru
      _
    // Predicated region
    $region14: #{cnn_block_forward.3} parent=1 // pred_check
      _
    $region15: #{cnn_block_forward.3} parent=1 // pred_check_branch
      %44 = sbr.rel (0) target = $region17
    $region16: #{cnn_block_forward.3} parent=1 // pred_region
      %45 = dma.done [#allocation3], 2048
    $region17: #{cnn_block_forward.3} parent=1 // pred_fallthru
      _
    // Predicated region
    $region18: #{cnn_block_forward.3} parent=1 // pred_check
      _
    $region19: #{cnn_block_forward.3} parent=1 // pred_check_branch
      %47 = sbr.rel (0) target = $region21
    $region20: #{cnn_block_forward.3} parent=1 // pred_region
      %48 = dma.done [#allocation6], 16
    $region21: #{cnn_block_forward.3} parent=1 // pred_fallthru
      _
    // Predicated region
    $region22: #{cnn_block_forward.3} parent=1 // pred_check
      _
    $region23: #{cnn_block_forward.3} parent=1 // pred_check_branch
      %50 = sbr.rel (0) target = $region25
    $region24: #{cnn_block_forward.3} parent=1 // pred_region
      %51 = dma.done [#allocation6], 16
    $region25: #{cnn_block_forward.3} parent=1 // pred_fallthru
      _
    %v52 = vld [vmem:[#allocation2] sm:$0xff]
    %v53 = vld [vmem:[#allocation2 + $0x8] sm:$0xff]
    %v54 = vld [vmem:[#allocation2 + $0x10] sm:$0xff]
    %v55 = vld [vmem:[#allocation2 + $0x18] sm:$0xff]
    %v56 = vld [vmem:[#allocation2 + $0x20] sm:$0xff]
    %v57 = vld [vmem:[#allocation2 + $0x28] sm:$0xff]
    %v58 = vld [vmem:[#allocation2 + $0x30] sm:$0xff]
    %v59 = vld [vmem:[#allocation2 + $0x38] sm:$0xff]
    %v60 = vld [vmem:[#allocation2 + $0x40] sm:$0xff]
    %v61 = vld [vmem:[#allocation2 + $0x48] sm:$0xff]
    %v62 = vld [vmem:[#allocation2 + $0x50] sm:$0xff]
    %v63 = vld [vmem:[#allocation2 + $0x58] sm:$0xff]
    %v64 = vld [vmem:[#allocation2 + $0x60] sm:$0xff]
    %v65 = vld [vmem:[#allocation2 + $0x68] sm:$0xff]
    %v66 = vld [vmem:[#allocation2 + $0x70] sm:$0xff]
    %v67 = vld [vmem:[#allocation2 + $0x78] sm:$0xff]
    %v68 = vld [vmem:[#allocation5] sm:$0x1]
    %v70 = vlaneseq
    %v71 = vshrl.u32 %v70, 7
    %v72 = vsub.s32 0, %v71
    %v73 = vrot.slane %v68, %v72
    %v75 = vmul.f32 %v52, %v73
    %v76 = vmul.f32 %v53, %v73
    %v77 = vmul.f32 %v54, %v73
    %v78 = vmul.f32 %v55, %v73
    %v79 = vmul.f32 %v56, %v73
    %v80 = vmul.f32 %v57, %v73
    %v81 = vmul.f32 %v58, %v73
    %v82 = vmul.f32 %v59, %v73
    %v83 = vmul.f32 %v60, %v73
    %v84 = vmul.f32 %v61, %v73
    %v85 = vmul.f32 %v62, %v73
    %v86 = vmul.f32 %v63, %v73
    %v87 = vmul.f32 %v64, %v73
    %v88 = vmul.f32 %v65, %v73
    %v89 = vmul.f32 %v66, %v73
    %v90 = vmul.f32 %v67, %v73
    %v91 = vld [vmem:[#allocation7] sm:$0x1]
    %v93 = vlaneseq
    %v94 = vshrl.u32 %v93, 7
    %v95 = vsub.s32 0, %v94
    %v96 = vrot.slane %v91, %v95
    %v98 = vadd.f32 %v75, %v96
    %v99 = vadd.f32 %v76, %v96
    %v100 = vadd.f32 %v77, %v96
    %v101 = vadd.f32 %v78, %v96
    %v102 = vadd.f32 %v79, %v96
    %v103 = vadd.f32 %v80, %v96
    %v104 = vadd.f32 %v81, %v96
    %v105 = vadd.f32 %v82, %v96
    %v106 = vadd.f32 %v83, %v96
    %v107 = vadd.f32 %v84, %v96
    %v108 = vadd.f32 %v85, %v96
    %v109 = vadd.f32 %v86, %v96
    %v110 = vadd.f32 %v87, %v96
    %v111 = vadd.f32 %v88, %v96
    %v112 = vadd.f32 %v89, %v96
    %v113 = vadd.f32 %v90, %v96
    %114 = vst [vmem:[#allocation8] sm:$0xff] %v98
    %115 = vst [vmem:[#allocation8 + $0x8] sm:$0xff] %v99
    %116 = vst [vmem:[#allocation8 + $0x10] sm:$0xff] %v100
    %117 = vst [vmem:[#allocation8 + $0x18] sm:$0xff] %v101
    %118 = vst [vmem:[#allocation8 + $0x20] sm:$0xff] %v102
    %119 = vst [vmem:[#allocation8 + $0x28] sm:$0xff] %v103
    %120 = vst [vmem:[#allocation8 + $0x30] sm:$0xff] %v104
    %121 = vst [vmem:[#allocation8 + $0x38] sm:$0xff] %v105
    %122 = vst [vmem:[#allocation8 + $0x40] sm:$0xff] %v106
    %123 = vst [vmem:[#allocation8 + $0x48] sm:$0xff] %v107
    %124 = vst [vmem:[#allocation8 + $0x50] sm:$0xff] %v108
    %125 = vst [vmem:[#allocation8 + $0x58] sm:$0xff] %v109
    %126 = vst [vmem:[#allocation8 + $0x60] sm:$0xff] %v110
    %127 = vst [vmem:[#allocation8 + $0x68] sm:$0xff] %v111
    %128 = vst [vmem:[#allocation8 + $0x70] sm:$0xff] %v112
    %129 = vst [vmem:[#allocation8 + $0x78] sm:$0xff] %v113
    // Predicated region
    $region26: #{cnn_block_forward.3} parent=1 // pred_check
      _
    $region27: #{cnn_block_forward.3} parent=1 // pred_check_branch
      %131 = sbr.rel (0) target = $region29
    $region28: #{cnn_block_forward.3} parent=1 // pred_region
      %s133 = ssub.s32 2048, 2048
      %134 = vsyncadd [#allocation4], %s133
      %s135 = sshll.u32 [#allocation8], 4
      %s136 = int_to_ptr.vmem [resolvable:$true] %s135
      %141 = dma.vmem_to_hbm [thread:$0]  %s136, 2048, %s3, [#allocation4], 128, 128, 8
    $region29: #{cnn_block_forward.3} parent=1 // pred_fallthru
      _
    // Predicated region
    $region30: #{cnn_block_forward.3} parent=1 // pred_check
      _
    $region31: #{cnn_block_forward.3} parent=1 // pred_check_branch
      %143 = sbr.rel (0) target = $region33
    $region32: #{cnn_block_forward.3} parent=1 // pred_region
      %144 = dma.done [#allocation4], 2048
    $region33: #{cnn_block_forward.3} parent=1 // pred_fallthru
      _
    %145 = vsyncpa [#allocation3], 1
    %146 = vsyncpa [#allocation6], 1
    %147 = vsyncpa [#allocation4], 1

// kernel: cnn_block_forward.2
$region0: #{cnn_block_forward.2}
  #allocation0 [shape = 'u32[]', space=smem, size = 0x4, offset = 0x4, fixed_abs, tag = 'smem constant byte address 0x4 - core index']
  #allocation1 [shape = 'u32[144,128]{1,0:T(1,128)}', space=vmem, size = 0x12000, scoped, tag = 'internal scratch']
  %s0 = inlined_call_operand.hbm [shape: bf16[4,128,36], index: 0, kind: input, shape index: {}]
  %s1 = inlined_call_operand.hbm [shape: bf16[36,128], index: 1, kind: input, shape index: {}]
  %s2 = inlined_call_operand.hbm [shape: f32[1,128], index: 2, kind: input, shape index: {}]
  %s3 = inlined_call_operand.hbm [shape: f32[128,128], index: 3, kind: output, shape index: {0}]
  %s4 = inlined_call_operand.hbm [shape: f32[2,128], index: 4, kind: output, shape index: {1}]
  %5 = xla_tuple %s3, %s4
  %s6 = sld [smem:[#allocation0]]
  $region46: #{cnn_block_forward.2} parent=0
    _
  %s8 = ssub.s32 1, %s6
  %s9 = scalar_select 0, %s8, %s6
  $region1: #{cnn_block_forward.2} parent=0
    #allocation2 [shape = 'u8[131072]{0}', space=vmem, size = 0x20000, scoped, tag = 'input window, operand 0, single buffered']
    #allocation3 [shape = 's32[1]{0}', space=sflag, size = 0x4, scoped, tag = 'scoped memory for cnn_block_forward.2']
    #allocation4 [shape = 's32[1]{0}', space=sflag, size = 0x4, scoped, tag = 'scoped memory for cnn_block_forward.2']
    #allocation5 [shape = 'u8[10240]{0}', space=vmem, size = 0x2800, scoped, tag = 'input window, operand 1, single buffered']
    #allocation6 [shape = 's32[1]{0}', space=sflag, size = 0x4, scoped, tag = 'scoped memory for cnn_block_forward.2']
    #allocation7 [shape = 'u8[512]{0}', space=vmem, size = 0x400, scoped, tag = 'input window, operand 2, single buffered']
    #allocation8 [shape = 'u8[65536]{0}', space=vmem, size = 0x10000, scoped, tag = 'output window, operand 0, single buffered']
    #allocation9 [shape = 'u8[1024]{0}', space=vmem, size = 0x400, scoped, tag = 'output window, operand 1, single buffered']
    #allocation10 [shape = 's32[1]{0}', space=sflag, size = 0x4, scoped, tag = 'scoped memory for cnn_block_forward.2']
    %10 = vsyncpa [#allocation3], 0
    %11 = vsyncpa [#allocation6], 0
    %12 = vsyncpa [#allocation4], 0
    %13 = vsyncpa [#allocation10], 0
    // Predicated region
    $region2: #{cnn_block_forward.2} parent=1 // pred_check
      _
    $region3: #{cnn_block_forward.2} parent=1 // pred_check_branch
      %15 = sbr.rel (0) target = $region5
    $region4: #{cnn_block_forward.2} parent=1 // pred_region
      %s17 = ssub.s32 4096, 4096
      %18 = vsyncadd [#allocation3], %s17
      %s19 = sshll.u32 [#allocation2], 4
      %s20 = int_to_ptr.vmem [resolvable:$true] %s19
      %25 = dma.hbm_to_vmem [thread:$0]  %s0, 4096, %s20, [#allocation3], 64, 64, 4
    $region5: #{cnn_block_forward.2} parent=1 // pred_fallthru
      _
    // Predicated region
    $region6: #{cnn_block_forward.2} parent=1 // pred_check
      _
    $region7: #{cnn_block_forward.2} parent=1 // pred_check_branch
      %27 = sbr.rel (0) target = $region9
    $region8: #{cnn_block_forward.2} parent=1 // pred_region
      %s29 = ssub.s32 320, 320
      %30 = vsyncadd [#allocation6], %s29
      %s31 = sshll.u32 [#allocation5], 4
      %s32 = int_to_ptr.vmem [resolvable:$true] %s31
      %37 = dma.hbm_to_vmem [thread:$0]  %s1, 320, %s32, [#allocation6], 64, 64, 4
    $region9: #{cnn_block_forward.2} parent=1 // pred_fallthru
      _
    // Predicated region
    $region10: #{cnn_block_forward.2} parent=1 // pred_check
      _
    $region11: #{cnn_block_forward.2} parent=1 // pred_check_branch
      %39 = sbr.rel (0) target = $region13
    $region12: #{cnn_block_forward.2} parent=1 // pred_region
      %s41 = ssub.s32 16, 16
      %42 = vsyncadd [#allocation6], %s41
      %s44 = sshll.u32 [#allocation7], 4
      %s45 = int_to_ptr.vmem [resolvable:$true] %s44
      %47 = dma.hbm_to_vmem [thread:$0]  %s2, 16, %s45, [#allocation6]
    $region13: #{cnn_block_forward.2} parent=1 // pred_fallthru
      _
    // Predicated region
    $region14: #{cnn_block_forward.2} parent=1 // pred_check
      _
    $region15: #{cnn_block_forward.2} parent=1 // pred_check_branch
      %49 = sbr.rel (0) target = $region17
    $region16: #{cnn_block_forward.2} parent=1 // pred_region
      %50 = dma.done [#allocation3], 4096
    $region17: #{cnn_block_forward.2} parent=1 // pred_fallthru
      _
    // Predicated region
    $region18: #{cnn_block_forward.2} parent=1 // pred_check
      _
    $region19: #{cnn_block_forward.2} parent=1 // pred_check_branch
      %52 = sbr.rel (0) target = $region21
    $region20: #{cnn_block_forward.2} parent=1 // pred_region
      %53 = dma.done [#allocation6], 320
    $region21: #{cnn_block_forward.2} parent=1 // pred_fallthru
      _
    // Predicated region
    $region22: #{cnn_block_forward.2} parent=1 // pred_check
      _
    $region23: #{cnn_block_forward.2} parent=1 // pred_check_branch
      %55 = sbr.rel (0) target = $region25
    $region24: #{cnn_block_forward.2} parent=1 // pred_region
      %56 = dma.done [#allocation6], 16
    $region25: #{cnn_block_forward.2} parent=1 // pred_fallthru
      _
    %p58 = scmp.eq.s32.totalorder 0, 0
    // Predicated region
    $region26: #{cnn_block_forward.2} parent=1 // pred_check
      %p59 = pneg %p58
    $region27: #{cnn_block_forward.2} parent=1 // pred_check_branch
      %61 = sbr.rel (%p59) target = $region29
    $region28: #{cnn_block_forward.2} parent=1 // pred_region
      %62 = vst [vmem:[#allocation9] sm:$0x3] 0.0
    $region29: #{cnn_block_forward.2} parent=1 // pred_fallthru
      _
    %v63 = vld [vmem:[#allocation2] sm:$0xf]
    %v64 = vld [vmem:[#allocation2 + $0x4] sm:$0xf]
    %v65 = vld [vmem:[#allocation2 + $0x8] sm:$0xf]
    %v66 = vld [vmem:[#allocation2 + $0xc] sm:$0xf]
    %v67 = vld [vmem:[#allocation2 + $0x10] sm:$0xf]
    %v68 = vld [vmem:[#allocation2 + $0x14] sm:$0xf]
    %v69 = vld [vmem:[#allocation2 + $0x18] sm:$0xf]
    %v70 = vld [vmem:[#allocation2 + $0x1c] sm:$0xf]
    %v71 = vld [vmem:[#allocation2 + $0x20] sm:$0xf]
    %v72 = vld [vmem:[#allocation2 + $0x24] sm:$0xf]
    %v73 = vld [vmem:[#allocation2 + $0x28] sm:$0xf]
    %v74 = vld [vmem:[#allocation2 + $0x2c] sm:$0xf]
    %v75 = vld [vmem:[#allocation2 + $0x30] sm:$0xf]
    %v76 = vld [vmem:[#allocation2 + $0x34] sm:$0xf]
    %v77 = vld [vmem:[#allocation2 + $0x38] sm:$0xf]
    %v78 = vld [vmem:[#allocation2 + $0x3c] sm:$0xf]
    %v79 = vld [vmem:[#allocation2 + $0x40] sm:$0xf]
    %v80 = vld [vmem:[#allocation2 + $0x44] sm:$0xf]
    %v81 = vld [vmem:[#allocation2 + $0x48] sm:$0xf]
    %v82 = vld [vmem:[#allocation2 + $0x4c] sm:$0xf]
    %v83 = vld [vmem:[#allocation2 + $0x50] sm:$0xf]
    %v84 = vld [vmem:[#allocation2 + $0x54] sm:$0xf]
    %v85 = vld [vmem:[#allocation2 + $0x58] sm:$0xf]
    %v86 = vld [vmem:[#allocation2 + $0x5c] sm:$0xf]
    %v87 = vld [vmem:[#allocation2 + $0x60] sm:$0xf]
    %v88 = vld [vmem:[#allocation2 + $0x64] sm:$0xf]
    %v89 = vld [vmem:[#allocation2 + $0x68] sm:$0xf]
    %v90 = vld [vmem:[#allocation2 + $0x6c] sm:$0xf]
    %v91 = vld [vmem:[#allocation2 + $0x70] sm:$0xf]
    %v92 = vld [vmem:[#allocation2 + $0x74] sm:$0xf]
    %v93 = vld [vmem:[#allocation2 + $0x78] sm:$0xf]
    %v94 = vld [vmem:[#allocation2 + $0x7c] sm:$0xf]
    %v95 = vld [vmem:[#allocation2 + $0x80] sm:$0xf]
    %v96 = vld [vmem:[#allocation2 + $0x84] sm:$0xf]
    %v97 = vld [vmem:[#allocation2 + $0x88] sm:$0xf]
    %v98 = vld [vmem:[#allocation2 + $0x8c] sm:$0xf]
    %v99 = vld [vmem:[#allocation2 + $0x90] sm:$0xf]
    %v100 = vld [vmem:[#allocation2 + $0x94] sm:$0xf]
    %v101 = vld [vmem:[#allocation2 + $0x98] sm:$0xf]
    %v102 = vld [vmem:[#allocation2 + $0x9c] sm:$0xf]
    %v103 = vld [vmem:[#allocation2 + $0xa0] sm:$0xf]
    %v104 = vld [vmem:[#allocation2 + $0xa4] sm:$0xf]
    %v105 = vld [vmem:[#allocation2 + $0xa8] sm:$0xf]
    %v106 = vld [vmem:[#allocation2 + $0xac] sm:$0xf]
    %v107 = vld [vmem:[#allocation2 + $0xb0] sm:$0xf]
    %v108 = vld [vmem:[#allocation2 + $0xb4] sm:$0xf]
    %v109 = vld [vmem:[#allocation2 + $0xb8] sm:$0xf]
    %v110 = vld [vmem:[#allocation2 + $0xbc] sm:$0xf]
    %v111 = vld [vmem:[#allocation2 + $0xc0] sm:$0xf]
    %v112 = vld [vmem:[#allocation2 + $0xc4] sm:$0xf]
    %v113 = vld [vmem:[#allocation2 + $0xc8] sm:$0xf]
    %v114 = vld [vmem:[#allocation2 + $0xcc] sm:$0xf]
    %v115 = vld [vmem:[#allocation2 + $0xd0] sm:$0xf]
    %v116 = vld [vmem:[#allocation2 + $0xd4] sm:$0xf]
    %v117 = vld [vmem:[#allocation2 + $0xd8] sm:$0xf]
    %v118 = vld [vmem:[#allocation2 + $0xdc] sm:$0xf]
    %v119 = vld [vmem:[#allocation2 + $0xe0] sm:$0xf]
    %v120 = vld [vmem:[#allocation2 + $0xe4] sm:$0xf]
    %v121 = vld [vmem:[#allocation2 + $0xe8] sm:$0xf]
    %v122 = vld [vmem:[#allocation2 + $0xec] sm:$0xf]
    %v123 = vld [vmem:[#allocation2 + $0xf0] sm:$0xf]
    %v124 = vld [vmem:[#allocation2 + $0xf4] sm:$0xf]
    %v125 = vld [vmem:[#allocation2 + $0xf8] sm:$0xf]
    %v126 = vld [vmem:[#allocation2 + $0xfc] sm:$0xf]
    %v127 = vld [vmem:[#allocation5] sm:$0xf]
    %v128 = vld [vmem:[#allocation5 + $0x4] sm:$0xf]
    %v129 = vld [vmem:[#allocation5 + $0x8] sm:$0xf]
    %v130 = vld [vmem:[#allocation5 + $0xc] sm:$0xf]
    %v131 = vld [vmem:[#allocation5 + $0x10] sm:$0x3]
    %v132 = vld [vmem:[#allocation7] sm:$0x1]
    %v197 = vunpack.c.l.b16 %v63
    %v198 = vunpack.c.l.b16 %v64
    %v199 = vunpack.c.l.b16 %v65
    %v200 = vunpack.c.l.b16 %v66
    %v201 = vunpack.c.l.b16 %v67
    %v202 = vunpack.c.l.b16 %v68
    %v203 = vunpack.c.l.b16 %v69
    %v204 = vunpack.c.l.b16 %v70
    %v205 = vunpack.c.l.b16 %v71
    %v206 = vunpack.c.l.b16 %v72
    %v207 = vunpack.c.l.b16 %v73
    %v208 = vunpack.c.l.b16 %v74
    %v209 = vunpack.c.l.b16 %v75
    %v210 = vunpack.c.l.b16 %v76
    %v211 = vunpack.c.l.b16 %v77
    %v212 = vunpack.c.l.b16 %v78
    %v213 = vunpack.c.l.b16 %v79
    %v214 = vunpack.c.l.b16 %v80
    %v215 = vunpack.c.l.b16 %v81
    %v216 = vunpack.c.l.b16 %v82
    %v217 = vunpack.c.l.b16 %v83
    %v218 = vunpack.c.l.b16 %v84
    %v219 = vunpack.c.l.b16 %v85
    %v220 = vunpack.c.l.b16 %v86
    %v221 = vunpack.c.l.b16 %v87
    %v222 = vunpack.c.l.b16 %v88
    %v223 = vunpack.c.l.b16 %v89
    %v224 = vunpack.c.l.b16 %v90
    %v225 = vunpack.c.l.b16 %v91
    %v226 = vunpack.c.l.b16 %v92
    %v227 = vunpack.c.l.b16 %v93
    %v228 = vunpack.c.l.b16 %v94
    %v229 = vunpack.c.l.b16 %v95
    %v230 = vunpack.c.l.b16 %v96
    %v231 = vunpack.c.l.b16 %v97
    %v232 = vunpack.c.l.b16 %v98
    %v233 = vunpack.c.l.b16 %v99
    %v234 = vunpack.c.l.b16 %v100
    %v235 = vunpack.c.l.b16 %v101
    %v236 = vunpack.c.l.b16 %v102
    %v237 = vunpack.c.l.b16 %v103
    %v238 = vunpack.c.l.b16 %v104
    %v239 = vunpack.c.l.b16 %v105
    %v240 = vunpack.c.l.b16 %v106
    %v241 = vunpack.c.l.b16 %v107
    %v242 = vunpack.c.l.b16 %v108
    %v243 = vunpack.c.l.b16 %v109
    %v244 = vunpack.c.l.b16 %v110
    %v245 = vunpack.c.l.b16 %v111
    %v246 = vunpack.c.l.b16 %v112
    %v247 = vunpack.c.l.b16 %v113
    %v248 = vunpack.c.l.b16 %v114
    %v249 = vunpack.c.l.b16 %v115
    %v250 = vunpack.c.l.b16 %v116
    %v251 = vunpack.c.l.b16 %v117
    %v252 = vunpack.c.l.b16 %v118
    %v253 = vunpack.c.l.b16 %v119
    %v254 = vunpack.c.l.b16 %v120
    %v255 = vunpack.c.l.b16 %v121
    %v256 = vunpack.c.l.b16 %v122
    %v257 = vunpack.c.l.b16 %v123
    %v258 = vunpack.c.l.b16 %v124
    %v259 = vunpack.c.l.b16 %v125
    %v260 = vunpack.c.l.b16 %v126
    %v261 = vpack.c.b16 %v198, %v197
    %v262 = vpack.c.b16 %v200, %v199
    %v263 = vpack.c.b16 %v202, %v201
    %v264 = vpack.c.b16 %v204, %v203
    %v265 = vpack.c.b16 %v206, %v205
    %v266 = vpack.c.b16 %v208, %v207
    %v267 = vpack.c.b16 %v210, %v209
    %v268 = vpack.c.b16 %v212, %v211
    %v269 = vpack.c.b16 %v214, %v213
    %v270 = vpack.c.b16 %v216, %v215
    %v271 = vpack.c.b16 %v218, %v217
    %v272 = vpack.c.b16 %v220, %v219
    %v273 = vpack.c.b16 %v222, %v221
    %v274 = vpack.c.b16 %v224, %v223
    %v275 = vpack.c.b16 %v226, %v225
    %v276 = vpack.c.b16 %v228, %v227
    %v277 = vpack.c.b16 %v230, %v229
    %v278 = vpack.c.b16 %v232, %v231
    %v279 = vpack.c.b16 %v234, %v233
    %v280 = vpack.c.b16 %v236, %v235
    %v281 = vpack.c.b16 %v238, %v237
    %v282 = vpack.c.b16 %v240, %v239
    %v283 = vpack.c.b16 %v242, %v241
    %v284 = vpack.c.b16 %v244, %v243
    %v285 = vpack.c.b16 %v246, %v245
    %v286 = vpack.c.b16 %v248, %v247
    %v287 = vpack.c.b16 %v250, %v249
    %v288 = vpack.c.b16 %v252, %v251
    %v289 = vpack.c.b16 %v254, %v253
    %v290 = vpack.c.b16 %v256, %v255
    %v291 = vpack.c.b16 %v258, %v257
    %v292 = vpack.c.b16 %v260, %v259
    %v298 = vunpack.c.l.b16 %v127
    %v299 = vunpack.c.l.b16 %v128
    %v300 = vunpack.c.l.b16 %v129
    %v301 = vunpack.c.l.b16 %v130
    %v302 = vunpack.c.l.b16 %v131
    %v303 = vpack.c.b16 %v299, %v298
    %v304 = vpack.c.b16 %v301, %v300
    %v305 = vpack.c.b16 %v302, %v302
    %vm308 = vcmask 293888
    %v310 = vsel %vm308, %v261, 0
    %v313 = vsel %vm308, %v262, 0
    %v316 = vsel %vm308, %v263, 0
    %v319 = vsel %vm308, %v264, 0
    %v322 = vsel %vm308, %v265, 0
    %v325 = vsel %vm308, %v266, 0
    %v328 = vsel %vm308, %v267, 0
    %v331 = vsel %vm308, %v268, 0
    %v334 = vsel %vm308, %v269, 0
    %v337 = vsel %vm308, %v270, 0
    %v340 = vsel %vm308, %v271, 0
    %v343 = vsel %vm308, %v272, 0
    %v346 = vsel %vm308, %v273, 0
    %v349 = vsel %vm308, %v274, 0
    %v352 = vsel %vm308, %v275, 0
    %v355 = vsel %vm308, %v276, 0
    %v358 = vsel %vm308, %v277, 0
    %v361 = vsel %vm308, %v278, 0
    %v364 = vsel %vm308, %v279, 0
    %v367 = vsel %vm308, %v280, 0
    %v370 = vsel %vm308, %v281, 0
    %v373 = vsel %vm308, %v282, 0
    %v376 = vsel %vm308, %v283, 0
    %v379 = vsel %vm308, %v284, 0
    %v382 = vsel %vm308, %v285, 0
    %v385 = vsel %vm308, %v286, 0
    %v388 = vsel %vm308, %v287, 0
    %v391 = vsel %vm308, %v288, 0
    %v394 = vsel %vm308, %v289, 0
    %v397 = vsel %vm308, %v290, 0
    %v400 = vsel %vm308, %v291, 0
    %v403 = vsel %vm308, %v292, 0
    %vm405 = vcmask 1041408
    %v407 = vsel %vm405, %v305, 0
    %409 = vmatprep.subr.bf16.mxu0 0
    %410 = vmatpush1.bf16.msra.mxu0 %v303
    %411 = vmatprep.subr.bf16.mxu0 0
    %412 = vmatpush1.bf16.msra.mxu0 %v304
    %413 = vmatprep.subr.bf16.mxu0 0
    %414 = vmatpush1.bf16.msra.mxu0 %v407
    %415 = vmatprep.subr.bf16.mxu0 0
    %416 = vmatpush1.bf16.msra.mxu0 0
    %417 = vmatprep.subr.bf16.mxu0 0
    %418 = vmatpush1.bf16.msra.mxu0 0
    %419 = vmatprep.subr.bf16.mxu0 0
    %420 = vmatpush1.bf16.msra.mxu0 0
    %421 = vmatprep.subr.bf16.mxu0 0
    %422 = vmatpush1.bf16.msra.mxu0 0
    %423 = vmatprep.subr.bf16.mxu0 0
    %424 = vmatpush1.bf16.msra.mxu0 0
    %425 = vmatprep.subr.bf16.mxu0 0
    %426 = vmatpush1.bf16.msra.mxu0 0
    %427 = vmatprep.subr.bf16.mxu0 0
    %428 = vmatpush1.bf16.msra.mxu0 0
    %429 = vmatprep.subr.bf16.mxu0 0
    %430 = vmatpush1.bf16.msra.mxu0 0
    %431 = vmatprep.subr.bf16.mxu0 0
    %432 = vmatpush1.bf16.msra.mxu0 0
    %433 = vmatprep.subr.bf16.mxu0 0
    %434 = vmatpush1.bf16.msra.mxu0 0
    %435 = vmatprep.subr.bf16.mxu0 0
    %436 = vmatpush1.bf16.msra.mxu0 0
    %437 = vmatprep.subr.bf16.mxu0 0
    %438 = vmatpush1.bf16.msra.mxu0 0
    %439 = vmatprep.subr.bf16.mxu0 0
    %440 = vmatpush1.bf16.msra.mxu0 0
    %441 = vmatprep.mubr.bf16.mxu0 0
    %442 = vmatmul.mubr.bf16.gmra.mrb[0].mxu0 %v310
    %v443 = vpop.f32.mrb[0].mxu0
    %v444 = vadd.f32 0.0, %v443
    %v445 = vpop.f32.mrb[0].mxu0
    %v446 = vpop.f32.mrb[0].mxu0
    %v447 = vadd.f32 0.0, %v446
    %v448 = vpop.f32.mrb[0].mxu0
    %449 = vmatprep.mubr.bf16.mxu0 0
    %450 = vmatmul.mubr.bf16.gmra.mrb[0].mxu0 %v313
    %v451 = vpop.f32.mrb[0].mxu0
    %v452 = vadd.f32 0.0, %v451
    %v453 = vpop.f32.mrb[0].mxu0
    %v454 = vpop.f32.mrb[0].mxu0
    %v455 = vadd.f32 0.0, %v454
    %v456 = vpop.f32.mrb[0].mxu0
    %457 = vmatprep.mubr.bf16.mxu0 0
    %458 = vmatmul.mubr.bf16.gmra.mrb[0].mxu0 %v316
    %v459 = vpop.f32.mrb[0].mxu0
    %v460 = vadd.f32 0.0, %v459
    %v461 = vpop.f32.mrb[0].mxu0
    %v462 = vpop.f32.mrb[0].mxu0
    %v463 = vadd.f32 0.0, %v462
    %v464 = vpop.f32.mrb[0].mxu0
    %465 = vmatprep.mubr.bf16.mxu0 0
    %466 = vmatmul.mubr.bf16.gmra.mrb[0].mxu0 %v319
    %v467 = vpop.f32.mrb[0].mxu0
    %v468 = vadd.f32 0.0, %v467
    %v469 = vpop.f32.mrb[0].mxu0
    %v470 = vpop.f32.mrb[0].mxu0
    %v471 = vadd.f32 0.0, %v470
    %v472 = vpop.f32.mrb[0].mxu0
    %473 = vmatprep.mubr.bf16.mxu0 0
    %474 = vmatmul.mubr.bf16.gmra.mrb[0].mxu0 %v322
    %v475 = vpop.f32.mrb[0].mxu0
    %v476 = vadd.f32 0.0, %v475
    %v477 = vpop.f32.mrb[0].mxu0
    %v478 = vpop.f32.mrb[0].mxu0
    %v479 = vadd.f32 0.0, %v478
    %v480 = vpop.f32.mrb[0].mxu0
    %481 = vmatprep.mubr.bf16.mxu0 0
    %482 = vmatmul.mubr.bf16.gmra.mrb[0].mxu0 %v325
    %v483 = vpop.f32.mrb[0].mxu0
    %v484 = vadd.f32 0.0, %v483
    %v485 = vpop.f32.mrb[0].mxu0
    %v486 = vpop.f32.mrb[0].mxu0
    %v487 = vadd.f32 0.0, %v486
    %v488 = vpop.f32.mrb[0].mxu0
    %489 = vmatprep.mubr.bf16.mxu0 0
    %490 = vmatmul.mubr.bf16.gmra.mrb[0].mxu0 %v328
    %v491 = vpop.f32.mrb[0].mxu0
    %v492 = vadd.f32 0.0, %v491
    %v493 = vpop.f32.mrb[0].mxu0
    %v494 = vpop.f32.mrb[0].mxu0
    %v495 = vadd.f32 0.0, %v494
    %v496 = vpop.f32.mrb[0].mxu0
    %497 = vmatprep.mubr.bf16.mxu0 0
    %498 = vmatmul.mubr.bf16.gmra.mrb[0].mxu0 %v331
    %v499 = vpop.f32.mrb[0].mxu0
    %v500 = vadd.f32 0.0, %v499
    %v501 = vpop.f32.mrb[0].mxu0
    %v502 = vpop.f32.mrb[0].mxu0
    %v503 = vadd.f32 0.0, %v502
    %v504 = vpop.f32.mrb[0].mxu0
    %505 = vmatprep.mubr.bf16.mxu0 0
    %506 = vmatmul.mubr.bf16.gmra.mrb[0].mxu0 %v334
    %v507 = vpop.f32.mrb[0].mxu0
    %v508 = vadd.f32 0.0, %v507
    %v509 = vpop.f32.mrb[0].mxu0
    %v510 = vpop.f32.mrb[0].mxu0
    %v511 = vadd.f32 0.0, %v510
    %v512 = vpop.f32.mrb[0].mxu0
    %513 = vmatprep.mubr.bf16.mxu0 0
    %514 = vmatmul.mubr.bf16.gmra.mrb[0].mxu0 %v337
    %v515 = vpop.f32.mrb[0].mxu0
    %v516 = vadd.f32 0.0, %v515
    %v517 = vpop.f32.mrb[0].mxu0
    %v518 = vpop.f32.mrb[0].mxu0
    %v519 = vadd.f32 0.0, %v518
    %v520 = vpop.f32.mrb[0].mxu0
    %521 = vmatprep.mubr.bf16.mxu0 0
    %522 = vmatmul.mubr.bf16.gmra.mrb[0].mxu0 %v340
    %v523 = vpop.f32.mrb[0].mxu0
    %v524 = vadd.f32 0.0, %v523
    %v525 = vpop.f32.mrb[0].mxu0
    %v526 = vpop.f32.mrb[0].mxu0
    %v527 = vadd.f32 0.0, %v526
    %v528 = vpop.f32.mrb[0].mxu0
    %529 = vmatprep.mubr.bf16.mxu0 0
    %530 = vmatmul.mubr.bf16.gmra.mrb[0].mxu0 %v343
    %v531 = vpop.f32.mrb[0].mxu0
    %v532 = vadd.f32 0.0, %v531
    %v533 = vpop.f32.mrb[0].mxu0
    %v534 = vpop.f32.mrb[0].mxu0
    %v535 = vadd.f32 0.0, %v534
    %v536 = vpop.f32.mrb[0].mxu0
    %537 = vmatprep.mubr.bf16.mxu0 0
    %538 = vmatmul.mubr.bf16.gmra.mrb[0].mxu0 %v346
    %v539 = vpop.f32.mrb[0].mxu0
    %v540 = vadd.f32 0.0, %v539
    %v541 = vpop.f32.mrb[0].mxu0
    %v542 = vpop.f32.mrb[0].mxu0
    %v543 = vadd.f32 0.0, %v542
    %v544 = vpop.f32.mrb[0].mxu0
    %545 = vmatprep.mubr.bf16.mxu0 0
    %546 = vmatmul.mubr.bf16.gmra.mrb[0].mxu0 %v349
    %v547 = vpop.f32.mrb[0].mxu0
    %v548 = vadd.f32 0.0, %v547
    %v549 = vpop.f32.mrb[0].mxu0
    %v550 = vpop.f32.mrb[0].mxu0
    %v551 = vadd.f32 0.0, %v550
    %v552 = vpop.f32.mrb[0].mxu0
    %553 = vmatprep.mubr.bf16.mxu0 0
    %554 = vmatmul.mubr.bf16.gmra.mrb[0].mxu0 %v352
    %v555 = vpop.f32.mrb[0].mxu0
    %v556 = vadd.f32 0.0, %v555
    %v557 = vpop.f32.mrb[0].mxu0
    %v558 = vpop.f32.mrb[0].mxu0
    %v559 = vadd.f32 0.0, %v558
    %v560 = vpop.f32.mrb[0].mxu0
    %561 = vmatprep.mubr.bf16.mxu0 0
    %562 = vmatmul.mubr.bf16.gmra.mrb[0].mxu0 %v355
    %v563 = vpop.f32.mrb[0].mxu0
    %v564 = vadd.f32 0.0, %v563
    %v565 = vpop.f32.mrb[0].mxu0
    %v566 = vpop.f32.mrb[0].mxu0
    %v567 = vadd.f32 0.0, %v566
    %v568 = vpop.f32.mrb[0].mxu0
    %569 = vmatprep.mubr.bf16.mxu0 0
    %570 = vmatmul.mubr.bf16.gmra.mrb[0].mxu0 %v358
    %v571 = vpop.f32.mrb[0].mxu0
    %v572 = vadd.f32 0.0, %v571
    %v573 = vpop.f32.mrb[0].mxu0
    %v574 = vpop.f32.mrb[0].mxu0
    %v575 = vadd.f32 0.0, %v574
    %v576 = vpop.f32.mrb[0].mxu0
    %577 = vmatprep.mubr.bf16.mxu0 0
    %578 = vmatmul.mubr.bf16.gmra.mrb[0].mxu0 %v361
    %v579 = vpop.f32.mrb[0].mxu0
    %v580 = vadd.f32 0.0, %v579
    %v581 = vpop.f32.mrb[0].mxu0
    %v582 = vpop.f32.mrb[0].mxu0
    %v583 = vadd.f32 0.0, %v582
    %v584 = vpop.f32.mrb[0].mxu0
    %585 = vmatprep.mubr.bf16.mxu0 0
    %586 = vmatmul.mubr.bf16.gmra.mrb[0].mxu0 %v364
    %v587 = vpop.f32.mrb[0].mxu0
    %v588 = vadd.f32 0.0, %v587
    %v589 = vpop.f32.mrb[0].mxu0
    %v590 = vpop.f32.mrb[0].mxu0
    %v591 = vadd.f32 0.0, %v590
    %v592 = vpop.f32.mrb[0].mxu0
    %593 = vmatprep.mubr.bf16.mxu0 0
    %594 = vmatmul.mubr.bf16.gmra.mrb[0].mxu0 %v367
    %v595 = vpop.f32.mrb[0].mxu0
    %v596 = vadd.f32 0.0, %v595
    %v597 = vpop.f32.mrb[0].mxu0
    %v598 = vpop.f32.mrb[0].mxu0
    %v599 = vadd.f32 0.0, %v598
    %v600 = vpop.f32.mrb[0].mxu0
    %601 = vmatprep.mubr.bf16.mxu0 0
    %602 = vmatmul.mubr.bf16.gmra.mrb[0].mxu0 %v370
    %v603 = vpop.f32.mrb[0].mxu0
    %v604 = vadd.f32 0.0, %v603
    %v605 = vpop.f32.mrb[0].mxu0
    %v606 = vpop.f32.mrb[0].mxu0
    %v607 = vadd.f32 0.0, %v606
    %v608 = vpop.f32.mrb[0].mxu0
    %609 = vmatprep.mubr.bf16.mxu0 0
    %610 = vmatmul.mubr.bf16.gmra.mrb[0].mxu0 %v373
    %v611 = vpop.f32.mrb[0].mxu0
    %v612 = vadd.f32 0.0, %v611
    %v613 = vpop.f32.mrb[0].mxu0
    %v614 = vpop.f32.mrb[0].mxu0
    %v615 = vadd.f32 0.0, %v614
    %v616 = vpop.f32.mrb[0].mxu0
    %617 = vmatprep.mubr.bf16.mxu0 0
    %618 = vmatmul.mubr.bf16.gmra.mrb[0].mxu0 %v376
    %v619 = vpop.f32.mrb[0].mxu0
    %v620 = vadd.f32 0.0, %v619
    %v621 = vpop.f32.mrb[0].mxu0
    %v622 = vpop.f32.mrb[0].mxu0
    %v623 = vadd.f32 0.0, %v622
    %v624 = vpop.f32.mrb[0].mxu0
    %625 = vmatprep.mubr.bf16.mxu0 0
    %626 = vmatmul.mubr.bf16.gmra.mrb[0].mxu0 %v379
    %v627 = vpop.f32.mrb[0].mxu0
    %v628 = vadd.f32 0.0, %v627
    %v629 = vpop.f32.mrb[0].mxu0
    %v630 = vpop.f32.mrb[0].mxu0
    %v631 = vadd.f32 0.0, %v630
    %v632 = vpop.f32.mrb[0].mxu0
    %633 = vmatprep.mubr.bf16.mxu0 0
    %634 = vmatmul.mubr.bf16.gmra.mrb[0].mxu0 %v382
    %v635 = vpop.f32.mrb[0].mxu0
    %v636 = vadd.f32 0.0, %v635
    %v637 = vpop.f32.mrb[0].mxu0
    %v638 = vpop.f32.mrb[0].mxu0
    %v639 = vadd.f32 0.0, %v638
    %v640 = vpop.f32.mrb[0].mxu0
    %641 = vmatprep.mubr.bf16.mxu0 0
    %642 = vmatmul.mubr.bf16.gmra.mrb[0].mxu0 %v385
    %v643 = vpop.f32.mrb[0].mxu0
    %v644 = vadd.f32 0.0, %v643
    %v645 = vpop.f32.mrb[0].mxu0
    %v646 = vpop.f32.mrb[0].mxu0
    %v647 = vadd.f32 0.0, %v646
    %v648 = vpop.f32.mrb[0].mxu0
    %649 = vmatprep.mubr.bf16.mxu0 0
    %650 = vmatmul.mubr.bf16.gmra.mrb[0].mxu0 %v388
    %v651 = vpop.f32.mrb[0].mxu0
    %v652 = vadd.f32 0.0, %v651
    %v653 = vpop.f32.mrb[0].mxu0
    %v654 = vpop.f32.mrb[0].mxu0
    %v655 = vadd.f32 0.0, %v654
    %v656 = vpop.f32.mrb[0].mxu0
    %657 = vmatprep.mubr.bf16.mxu0 0
    %658 = vmatmul.mubr.bf16.gmra.mrb[0].mxu0 %v391
    %v659 = vpop.f32.mrb[0].mxu0
    %v660 = vadd.f32 0.0, %v659
    %v661 = vpop.f32.mrb[0].mxu0
    %v662 = vpop.f32.mrb[0].mxu0
    %v663 = vadd.f32 0.0, %v662
    %v664 = vpop.f32.mrb[0].mxu0
    %665 = vmatprep.mubr.bf16.mxu0 0
    %666 = vmatmul.mubr.bf16.gmra.mrb[0].mxu0 %v394
    %v667 = vpop.f32.mrb[0].mxu0
    %v668 = vadd.f32 0.0, %v667
    %v669 = vpop.f32.mrb[0].mxu0
    %v670 = vpop.f32.mrb[0].mxu0
    %v671 = vadd.f32 0.0, %v670
    %v672 = vpop.f32.mrb[0].mxu0
    %673 = vmatprep.mubr.bf16.mxu0 0
    %674 = vmatmul.mubr.bf16.gmra.mrb[0].mxu0 %v397
    %v675 = vpop.f32.mrb[0].mxu0
    %v676 = vadd.f32 0.0, %v675
    %v677 = vpop.f32.mrb[0].mxu0
    %v678 = vpop.f32.mrb[0].mxu0
    %v679 = vadd.f32 0.0, %v678
    %v680 = vpop.f32.mrb[0].mxu0
    %681 = vmatprep.mubr.bf16.mxu0 0
    %682 = vmatmul.mubr.bf16.gmra.mrb[0].mxu0 %v400
    %v683 = vpop.f32.mrb[0].mxu0
    %v684 = vadd.f32 0.0, %v683
    %v685 = vpop.f32.mrb[0].mxu0
    %v686 = vpop.f32.mrb[0].mxu0
    %v687 = vadd.f32 0.0, %v686
    %v688 = vpop.f32.mrb[0].mxu0
    %689 = vmatprep.mubr.bf16.mxu0 0
    %690 = vmatmul.mubr.bf16.gmra.mrb[0].mxu0 %v403
    %v691 = vpop.f32.mrb[0].mxu0
    %v692 = vadd.f32 0.0, %v691
    %v693 = vpop.f32.mrb[0].mxu0
    %v694 = vpop.f32.mrb[0].mxu0
    %v695 = vadd.f32 0.0, %v694
    %v696 = vpop.f32.mrb[0].mxu0
    %697 = vdwg.mxu0
    %v698 = vmax.f32 %v444, %v508
    %v699 = vmax.f32 %v698, %v572
    %v700 = vmax.f32 %v699, %v636
    %v701 = vmax.f32 %v447, %v511
    %v702 = vmax.f32 %v701, %v575
    %v703 = vmax.f32 %v702, %v639
    %v704 = vmax.f32 %v452, %v516
    %v705 = vmax.f32 %v704, %v580
    %v706 = vmax.f32 %v705, %v644
    %v707 = vmax.f32 %v455, %v519
    %v708 = vmax.f32 %v707, %v583
    %v709 = vmax.f32 %v708, %v647
    %v710 = vmax.f32 %v460, %v524
    %v711 = vmax.f32 %v710, %v588
    %v712 = vmax.f32 %v711, %v652
    %v713 = vmax.f32 %v463, %v527
    %v714 = vmax.f32 %v713, %v591
    %v715 = vmax.f32 %v714, %v655
    %v716 = vmax.f32 %v468, %v532
    %v717 = vmax.f32 %v716, %v596
    %v718 = vmax.f32 %v717, %v660
    %v719 = vmax.f32 %v471, %v535
    %v720 = vmax.f32 %v719, %v599
    %v721 = vmax.f32 %v720, %v663
    %v722 = vmax.f32 %v476, %v540
    %v723 = vmax.f32 %v722, %v604
    %v724 = vmax.f32 %v723, %v668
    %v725 = vmax.f32 %v479, %v543
    %v726 = vmax.f32 %v725, %v607
    %v727 = vmax.f32 %v726, %v671
    %v728 = vmax.f32 %v484, %v548
    %v729 = vmax.f32 %v728, %v612
    %v730 = vmax.f32 %v729, %v676
    %v731 = vmax.f32 %v487, %v551
    %v732 = vmax.f32 %v731, %v615
    %v733 = vmax.f32 %v732, %v679
    %v734 = vmax.f32 %v492, %v556
    %v735 = vmax.f32 %v734, %v620
    %v736 = vmax.f32 %v735, %v684
    %v737 = vmax.f32 %v495, %v559
    %v738 = vmax.f32 %v737, %v623
    %v739 = vmax.f32 %v738, %v687
    %v740 = vmax.f32 %v500, %v564
    %v741 = vmax.f32 %v740, %v628
    %v742 = vmax.f32 %v741, %v692
    %v743 = vmax.f32 %v503, %v567
    %v744 = vmax.f32 %v743, %v631
    %v745 = vmax.f32 %v744, %v695
    %v747 = vlaneseq
    %v748 = vshrl.u32 %v747, 7
    %v749 = vsub.s32 0, %v748
    %v750 = vrot.slane %v132, %v749
    %v752 = vadd.f32 %v700, %v750
    %v753 = vadd.f32 %v703, %v750
    %v754 = vadd.f32 %v706, %v750
    %v755 = vadd.f32 %v709, %v750
    %v756 = vadd.f32 %v712, %v750
    %v757 = vadd.f32 %v715, %v750
    %v758 = vadd.f32 %v718, %v750
    %v759 = vadd.f32 %v721, %v750
    %v760 = vadd.f32 %v724, %v750
    %v761 = vadd.f32 %v727, %v750
    %v762 = vadd.f32 %v730, %v750
    %v763 = vadd.f32 %v733, %v750
    %v764 = vadd.f32 %v736, %v750
    %v765 = vadd.f32 %v739, %v750
    %v766 = vadd.f32 %v742, %v750
    %v767 = vadd.f32 %v745, %v750
    %v768 = vmax.f32 %v752, 0.0
    %v769 = vmax.f32 %v753, 0.0
    %v770 = vmax.f32 %v754, 0.0
    %v771 = vmax.f32 %v755, 0.0
    %v772 = vmax.f32 %v756, 0.0
    %v773 = vmax.f32 %v757, 0.0
    %v774 = vmax.f32 %v758, 0.0
    %v775 = vmax.f32 %v759, 0.0
    %v776 = vmax.f32 %v760, 0.0
    %v777 = vmax.f32 %v761, 0.0
    %v778 = vmax.f32 %v762, 0.0
    %v779 = vmax.f32 %v763, 0.0
    %v780 = vmax.f32 %v764, 0.0
    %v781 = vmax.f32 %v765, 0.0
    %v782 = vmax.f32 %v766, 0.0
    %v783 = vmax.f32 %v767, 0.0
    %784 = vst [vmem:[#allocation8] sm:$0xff] %v768
    %785 = vst [vmem:[#allocation8 + $0x8] sm:$0xff] %v769
    %786 = vst [vmem:[#allocation8 + $0x10] sm:$0xff] %v770
    %787 = vst [vmem:[#allocation8 + $0x18] sm:$0xff] %v771
    %788 = vst [vmem:[#allocation8 + $0x20] sm:$0xff] %v772
    %789 = vst [vmem:[#allocation8 + $0x28] sm:$0xff] %v773
    %790 = vst [vmem:[#allocation8 + $0x30] sm:$0xff] %v774
    %791 = vst [vmem:[#allocation8 + $0x38] sm:$0xff] %v775
    %792 = vst [vmem:[#allocation8 + $0x40] sm:$0xff] %v776
    %793 = vst [vmem:[#allocation8 + $0x48] sm:$0xff] %v777
    %794 = vst [vmem:[#allocation8 + $0x50] sm:$0xff] %v778
    %795 = vst [vmem:[#allocation8 + $0x58] sm:$0xff] %v779
    %796 = vst [vmem:[#allocation8 + $0x60] sm:$0xff] %v780
    %797 = vst [vmem:[#allocation8 + $0x68] sm:$0xff] %v781
    %798 = vst [vmem:[#allocation8 + $0x70] sm:$0xff] %v782
    %799 = vst [vmem:[#allocation8 + $0x78] sm:$0xff] %v783
    %v800 = vadd.f32 %v768, %v769
    %v801 = vadd.f32 %v800, %v770
    %v802 = vadd.f32 %v801, %v771
    %v803 = vadd.f32 %v802, %v772
    %v804 = vadd.f32 %v803, %v773
    %v805 = vadd.f32 %v804, %v774
    %v806 = vadd.f32 %v805, %v775
    %v807 = vadd.f32 %v806, %v776
    %v808 = vadd.f32 %v807, %v777
    %v809 = vadd.f32 %v808, %v778
    %v810 = vadd.f32 %v809, %v779
    %v811 = vadd.f32 %v810, %v780
    %v812 = vadd.f32 %v811, %v781
    %v813 = vadd.f32 %v812, %v782
    %v814 = vadd.f32 %v813, %v783
    %v815 = vrot.slane %v814, 4
    %v816 = vadd.f32 %v814, %v815
    %v817 = vrot.slane %v816, 2
    %v818 = vadd.f32 %v816, %v817
    %v819 = vrot.slane %v818, 1
    %v820 = vadd.f32 %v818, %v819
    %v821 = vmul.f32 %v768, %v768
    %v822 = vmul.f32 %v769, %v769
    %v823 = vmul.f32 %v770, %v770
    %v824 = vmul.f32 %v771, %v771
    %v825 = vmul.f32 %v772, %v772
    %v826 = vmul.f32 %v773, %v773
    %v827 = vmul.f32 %v774, %v774
    %v828 = vmul.f32 %v775, %v775
    %v829 = vmul.f32 %v776, %v776
    %v830 = vmul.f32 %v777, %v777
    %v831 = vmul.f32 %v778, %v778
    %v832 = vmul.f32 %v779, %v779
    %v833 = vmul.f32 %v780, %v780
    %v834 = vmul.f32 %v781, %v781
    %v835 = vmul.f32 %v782, %v782
    %v836 = vmul.f32 %v783, %v783
    %v837 = vadd.f32 %v821, %v822
    %v838 = vadd.f32 %v837, %v823
    %v839 = vadd.f32 %v838, %v824
    %v840 = vadd.f32 %v839, %v825
    %v841 = vadd.f32 %v840, %v826
    %v842 = vadd.f32 %v841, %v827
    %v843 = vadd.f32 %v842, %v828
    %v844 = vadd.f32 %v843, %v829
    %v845 = vadd.f32 %v844, %v830
    %v846 = vadd.f32 %v845, %v831
    %v847 = vadd.f32 %v846, %v832
    %v848 = vadd.f32 %v847, %v833
    %v849 = vadd.f32 %v848, %v834
    %v850 = vadd.f32 %v849, %v835
    %v851 = vadd.f32 %v850, %v836
    %v852 = vrot.slane %v851, 4
    %v853 = vadd.f32 %v851, %v852
    %v854 = vrot.slane %v853, 2
    %v855 = vadd.f32 %v853, %v854
    %v856 = vrot.slane %v855, 1
    %v857 = vadd.f32 %v855, %v856
    %v858 = vld [vmem:[#allocation9] sm:$0x3]
    %vm859 = vcmask 1040384
    %v860 = vsel %vm859, %v820, %v857
    %v861 = vadd.f32 %v858, %v860
    %862 = vst [vmem:[#allocation9] sm:$0x3] %v861
    // Predicated region
    $region30: #{cnn_block_forward.2} parent=1 // pred_check
      _
    $region31: #{cnn_block_forward.2} parent=1 // pred_check_branch
      %864 = sbr.rel (0) target = $region33
    $region32: #{cnn_block_forward.2} parent=1 // pred_region
      %s866 = ssub.s32 2048, 2048
      %867 = vsyncadd [#allocation4], %s866
      %s868 = sshll.u32 [#allocation8], 4
      %s869 = int_to_ptr.vmem [resolvable:$true] %s868
      %874 = dma.vmem_to_hbm [thread:$0]  %s869, 2048, %s3, [#allocation4], 128, 128, 8
    $region33: #{cnn_block_forward.2} parent=1 // pred_fallthru
      _
    // Predicated region
    $region34: #{cnn_block_forward.2} parent=1 // pred_check
      _
    $region35: #{cnn_block_forward.2} parent=1 // pred_check_branch
      %876 = sbr.rel (0) target = $region37
    $region36: #{cnn_block_forward.2} parent=1 // pred_region
      %s878 = ssub.s32 32, 32
      %879 = vsyncadd [#allocation10], %s878
      %s881 = sshll.u32 [#allocation9], 4
      %s882 = int_to_ptr.vmem [resolvable:$true] %s881
      %884 = dma.vmem_to_hbm [thread:$0]  %s882, 32, %s4, [#allocation10]
    $region37: #{cnn_block_forward.2} parent=1 // pred_fallthru
      _
    // Predicated region
    $region38: #{cnn_block_forward.2} parent=1 // pred_check
      _
    $region39: #{cnn_block_forward.2} parent=1 // pred_check_branch
      %886 = sbr.rel (0) target = $region41
    $region40: #{cnn_block_forward.2} parent=1 // pred_region
      %887 = dma.done [#allocation4], 2048
    $region41: #{cnn_block_forward.2} parent=1 // pred_fallthru
      _
    // Predicated region
    $region42: #{cnn_block_forward.2} parent=1 // pred_check
      _
    $region43: #{cnn_block_forward.2} parent=1 // pred_check_branch
      %889 = sbr.rel (0) target = $region45
    $region44: #{cnn_block_forward.2} parent=1 // pred_region
      %890 = dma.done [#allocation10], 32
    $region45: #{cnn_block_forward.2} parent=1 // pred_fallthru
      _
    %891 = vsyncpa [#allocation3], 1
    %892 = vsyncpa [#allocation6], 1
    %893 = vsyncpa [#allocation4], 1
    %894 = vsyncpa [#allocation10], 1

</llo_original>
